<compile_context>
chip_gen: v6e
topology: v6e:2x2x1
jax: 0.10.0
libtpu: 0.0.40
codegen_flags: <defaults>
</compile_context>

<pallas_src>
import jax
import jax.numpy as jnp
from jax import lax
from jax.experimental import pallas as pl
from jax.experimental.pallas import tpu as pltpu


_SUBLANE = 8     # second-to-last block dim granularity
_EPS = 1e-12


def _l2norm_kernel(x_ref, o_ref):
    """Row-wise L2 normalization of a (tile_b, D) VMEM tile."""
    x = x_ref[...]
    xf = x.astype(jnp.float32)                       # f32 accumulation
    ss = jnp.sum(xf * xf, axis=-1, keepdims=True)    # row reduce (XLU)
    inv = lax.rsqrt(ss + _EPS)                       # EUP rsqrt (free slot)
    # Scale in f32 and cast once at the store (kernel is DMA-bound; the f32
    # multiply rides in VALU slack and keeps full precision for bf16 inputs).
    o_ref[...] = (xf * inv).astype(o_ref.dtype)


def _round_up(n, m):
    return ((n + m - 1) // m) * m


def _vmem_capacity_bytes():
    try:
        return int(pltpu.get_tpu_info().vmem_capacity_bytes)
    except Exception:
        return 64 * 1024 * 1024   # conservative default (v7x per-TC VMEM)


def _num_tensorcores():
    """Best-effort TensorCore-per-device count (2 on v7x, else 1)."""
    try:
        info = pltpu.get_tpu_info()
        for attr in ("num_tensorcores", "tensorcore_count", "num_cores", "core_count"):
            v = getattr(info, attr, None)
            if v:
                return int(v)
    except Exception:
        pass
    try:
        if "v7" in jax.devices()[0].device_kind.lower():
            return 2
    except Exception:
        pass
    return 1


def _pick_tile_b(B, D, itemsize, vmem_limit, num_tc):
    """Largest row-tile that fits the *same* VMEM limit handed to the
    compiler (double-buffered in+out blocks plus in-kernel f32 temporaries),
    capped at 1024 rows (HBM roofline).  On 2-TC parts (v7x) the tile is
    shrunk so the grid has an even (>=2) number of steps for megacore."""
    # live bytes / element: 2x input block + 2x output block + f32 upcast temp.
    bytes_per_elem = 4 * itemsize + 4
    budget = max(vmem_limit - (8 << 20), 4 << 20)     # margin for compiler scratch
    max_rows = budget // (bytes_per_elem * max(D, 1))
    max_rows = max(_SUBLANE, (max_rows // _SUBLANE) * _SUBLANE)
    tile_b = max(_SUBLANE, min(max_rows, 1024))

    if num_tc >= 2:
        steps = pl.cdiv(B, tile_b)
        if steps < 2 or steps % 2 != 0:
            target = max(2, steps + (steps % 2))      # next even step count
            tile_b = max(_SUBLANE,
                         min(tile_b, _round_up(pl.cdiv(B, target), _SUBLANE)))
    return tile_b


def functional_module_forward(x):
    """Pallas implementation of FunctionalModule(fn=l2_normalize).forward(x)."""
    orig_shape = x.shape
    orig_dtype = x.dtype
    D = orig_shape[-1]
    x2 = x.reshape(-1, D)
    B = x2.shape[0]

    itemsize = jnp.dtype(orig_dtype).itemsize
    num_tc = _num_tensorcores()
    vmem_limit = int(_vmem_capacity_bytes() * 0.8)    # never >80% of physical
    tile_b = _pick_tile_b(B, D, itemsize, vmem_limit, num_tc)

    grid = (pl.cdiv(B, tile_b),)   # ragged B -> implicit partial last block

    cost = pl.CostEstimate(
        flops=3 * B * D,              # square-mul + reduce-add + scale-mul
        transcendentals=B,            # one rsqrt per row
        bytes_accessed=2 * B * D * itemsize,
    )

    # TODO(synk): for very large D (a full row block exceeding VMEM) a
    #             reduction grid axis over D with an f32 per-row scratch
    #             accumulator would be needed; full rows are assumed to fit
    #             one VMEM block here.
    y = pl.pallas_call(
        _l2norm_kernel,
        out_shape=jax.ShapeDtypeStruct((B, D), orig_dtype),
        grid_spec=pltpu.PrefetchScalarGridSpec(
            num_scalar_prefetch=0,
            grid=grid,
            # Last block dim == full D (allowed even when D % 128 != 0), so
            # the row reduce covers exactly D lanes and no padding is needed.
            in_specs=[pl.BlockSpec((tile_b, D), lambda i: (i, 0))],
            out_specs=pl.BlockSpec((tile_b, D), lambda i: (i, 0)),
        ),
        compiler_params=pltpu.CompilerParams(
            dimension_semantics=("parallel",),
            vmem_limit_bytes=vmem_limit,
        ),
        cost_estimate=cost,
    )(x2)

    return y.reshape(orig_shape)


if __name__ == "__main__":
    key = jax.random.PRNGKey(0)
    k1, k2, k3 = jax.random.split(key, 3)

    def ref(x):
        xf = x.astype(jnp.float32)
        return xf / jnp.sqrt(jnp.sum(xf * xf, axis=-1, keepdims=True) + _EPS)

    # (8, 128): aligned fast path.
    xa = jax.random.normal(k1, (8, 128), dtype=jnp.float32)
    ya = jax.block_until_ready(functional_module_forward(xa))
    assert ya.shape == xa.shape and ya.dtype == xa.dtype
    assert jnp.max(jnp.abs(ya - ref(xa))) < 1e-5

    # (10, 96): ragged batch + non-128 feature dim (partial block, full-D block).
    xb = jax.random.normal(k2, (10, 96), dtype=jnp.float32)
    yb = jax.block_until_ready(functional_module_forward(xb))
    assert yb.shape == xb.shape and yb.dtype == xb.dtype
    assert jnp.max(jnp.abs(yb - ref(xb))) < 1e-5

    # (2, 6, 64) bf16: leading dims flattened, f32 scale + single cast at store.
    xc = jax.random.normal(k3, (2, 6, 64), dtype=jnp.bfloat16)
    yc = jax.block_until_ready(functional_module_forward(xc))
    assert yc.shape == xc.shape and yc.dtype == xc.dtype
    assert jnp.max(jnp.abs(yc.astype(jnp.float32) - ref(xc))) < 1e-2

    print("KERNEL_OK")
</pallas_src>

<mosaic_0001>
module attributes {stable_mosaic.version = 11 : i64} {
  func.func @_l2norm_kernel(%arg0: i32, %arg1: memref<1024x128xf32, #tpu.memory_space<vmem>>, %arg2: memref<1024x128xf32, #tpu.memory_space<vmem>>) attributes {dimension_semantics = [#tpu.dimension_semantics<parallel>], iteration_bounds = array<i64: 1>, scalar_prefetch = 0 : i64, scratch_operands = 0 : i64, tpu.core_type = #tpu.core_type<tc>, window_params = [{transform_indices = @transform_0, window_bounds = array<i64: 1024, 128>}, {transform_indices = @transform_1, window_bounds = array<i64: 1024, 128>}]} {
    %c0 = arith.constant 0 : index
    %c0_0 = arith.constant 0 : index
    %0 = vector.load %arg1[%c0, %c0_0] : memref<1024x128xf32, #tpu.memory_space<vmem>>, vector<1024x128xf32>
    %1 = arith.mulf %0, %0 : vector<1024x128xf32>
    %cst = arith.constant dense<0.000000e+00> : vector<1024xf32>
    %2 = vector.multi_reduction <add>, %1, %cst [1] : vector<1024x128xf32> to vector<1024xf32>
    %3 = vector.shape_cast %2 : vector<1024xf32> to vector<1024x1xf32>
    %cst_1 = arith.constant 9.99999996E-13 : f32
    %4 = vector.broadcast %cst_1 : f32 to vector<1024x1xf32>
    %5 = arith.addf %3, %4 : vector<1024x1xf32>
    %6 = math.rsqrt %5 : vector<1024x1xf32>
    %7 = vector.broadcast %6 : vector<1024x1xf32> to vector<1024x128xf32>
    %8 = arith.mulf %0, %7 : vector<1024x128xf32>
    %c0_2 = arith.constant 0 : index
    %c0_3 = arith.constant 0 : index
    %9 = vector.load %arg2[%c0_2, %c0_3] : memref<1024x128xf32, #tpu.memory_space<vmem>>, vector<1024x128xf32>
    tpu.vector_store %arg2[%c0_2, %c0_3], %8 {strides = array<i32>} : memref<1024x128xf32, #tpu.memory_space<vmem>>, vector<1024x128xf32>,
    return
  }
  func.func @transform_0(%arg0: i32) -> (i32, i32) {
    %c0_i32 = arith.constant 0 : i32
    %c0_i32_0 = arith.constant 0 : i32
    return %arg0, %c0_i32 : i32, i32
  }
  func.func @transform_1(%arg0: i32) -> (i32, i32) {
    %c0_i32 = arith.constant 0 : i32
    %c0_i32_0 = arith.constant 0 : i32
    return %arg0, %c0_i32 : i32, i32
  }
}

</mosaic_0001>

<llo_original>
// kernel: tpu_custom_call.1
$region0: #{tpu_custom_call.1}
  #allocation0 [shape = 'u32[]', space=smem, size = 0x4, offset = 0x4, fixed_abs, tag = 'smem constant byte address 0x4 - core index']
  #allocation1 [shape = 'u32[144,128]{1,0:T(1,128)}', space=vmem, size = 0x12000, scoped, tag = 'internal scratch']
  %s0 = inlined_call_operand.hbm [shape: f32[8,128], index: 0, kind: input, shape index: {}]
  %s1 = inlined_call_operand.hbm [shape: f32[8,128], index: 1, kind: output, shape index: {}]
  %s2 = sld [smem:[#allocation0]]
  $region18: #{tpu_custom_call.1} parent=0
    _
  %s4 = ssub.s32 1, %s2
  %s5 = scalar_select 0, %s4, %s2
  $region1: #{tpu_custom_call.1} parent=0
    #allocation2 [shape = 'u8[524288]{0}', space=vmem, size = 0x80000, scoped, tag = 'input window, operand 0, single buffered']
    #allocation3 [shape = 's32[1]{0}', space=sflag, size = 0x4, scoped, tag = 'scoped memory for tpu_custom_call.1']
    #allocation4 [shape = 's32[1]{0}', space=sflag, size = 0x4, scoped, tag = 'scoped memory for tpu_custom_call.1']
    #allocation5 [shape = 'u8[524288]{0}', space=vmem, size = 0x80000, scoped, tag = 'output window, operand 0, single buffered']
    %6 = vsyncpa [#allocation3], 0
    %7 = vsyncpa [#allocation4], 0
    // Predicated region
    $region2: #{tpu_custom_call.1} parent=1 // pred_check
      _
    $region3: #{tpu_custom_call.1} parent=1 // pred_check_branch
      %9 = sbr.rel (0) target = $region5
    $region4: #{tpu_custom_call.1} parent=1 // pred_region
      %s11 = ssub.s32 16384, 128
      %12 = vsyncadd [#allocation3], %s11
      %s13 = sshll.u32 [#allocation2], 4
      %s14 = int_to_ptr.vmem [resolvable:$true] %s13
      %19 = dma.hbm_to_vmem [thread:$0]  %s0, 128, %s14, [#allocation3], 128, 128, 8
    $region5: #{tpu_custom_call.1} parent=1 // pred_fallthru
      _
    // Predicated region
    $region6: #{tpu_custom_call.1} parent=1 // pred_check
      _
    $region7: #{tpu_custom_call.1} parent=1 // pred_check_branch
      %21 = sbr.rel (0) target = $region9
    $region8: #{tpu_custom_call.1} parent=1 // pred_region
      %22 = dma.done [#allocation3], 16384
    $region9: #{tpu_custom_call.1} parent=1 // pred_fallthru
      _
    %v23 = vld [vmem:[#allocation2] sm:$0xff]
    %v24 = vld [vmem:[#allocation2 + $0x8] sm:$0xff]
    %v25 = vld [vmem:[#allocation2 + $0x10] sm:$0xff]
    %v26 = vld [vmem:[#allocation2 + $0x18] sm:$0xff]
    %v27 = vld [vmem:[#allocation2 + $0x20] sm:$0xff]
    %v28 = vld [vmem:[#allocation2 + $0x28] sm:$0xff]
    %v29 = vld [vmem:[#allocation2 + $0x30] sm:$0xff]
    %v30 = vld [vmem:[#allocation2 + $0x38] sm:$0xff]
    %v31 = vld [vmem:[#allocation2 + $0x40] sm:$0xff]
    %v32 = vld [vmem:[#allocation2 + $0x48] sm:$0xff]
    %v33 = vld [vmem:[#allocation2 + $0x50] sm:$0xff]
    %v34 = vld [vmem:[#allocation2 + $0x58] sm:$0xff]
    %v35 = vld [vmem:[#allocation2 + $0x60] sm:$0xff]
    %v36 = vld [vmem:[#allocation2 + $0x68] sm:$0xff]
    %v37 = vld [vmem:[#allocation2 + $0x70] sm:$0xff]
    %v38 = vld [vmem:[#allocation2 + $0x78] sm:$0xff]
    %v39 = vld [vmem:[#allocation2 + $0x80] sm:$0xff]
    %v40 = vld [vmem:[#allocation2 + $0x88] sm:$0xff]
    %v41 = vld [vmem:[#allocation2 + $0x90] sm:$0xff]
    %v42 = vld [vmem:[#allocation2 + $0x98] sm:$0xff]
    %v43 = vld [vmem:[#allocation2 + $0xa0] sm:$0xff]
    %v44 = vld [vmem:[#allocation2 + $0xa8] sm:$0xff]
    %v45 = vld [vmem:[#allocation2 + $0xb0] sm:$0xff]
    %v46 = vld [vmem:[#allocation2 + $0xb8] sm:$0xff]
    %v47 = vld [vmem:[#allocation2 + $0xc0] sm:$0xff]
    %v48 = vld [vmem:[#allocation2 + $0xc8] sm:$0xff]
    %v49 = vld [vmem:[#allocation2 + $0xd0] sm:$0xff]
    %v50 = vld [vmem:[#allocation2 + $0xd8] sm:$0xff]
    %v51 = vld [vmem:[#allocation2 + $0xe0] sm:$0xff]
    %v52 = vld [vmem:[#allocation2 + $0xe8] sm:$0xff]
    %v53 = vld [vmem:[#allocation2 + $0xf0] sm:$0xff]
    %v54 = vld [vmem:[#allocation2 + $0xf8] sm:$0xff]
    %v55 = vld [vmem:[#allocation2 + $0x100] sm:$0xff]
    %v56 = vld [vmem:[#allocation2 + $0x108] sm:$0xff]
    %v57 = vld [vmem:[#allocation2 + $0x110] sm:$0xff]
    %v58 = vld [vmem:[#allocation2 + $0x118] sm:$0xff]
    %v59 = vld [vmem:[#allocation2 + $0x120] sm:$0xff]
    %v60 = vld [vmem:[#allocation2 + $0x128] sm:$0xff]
    %v61 = vld [vmem:[#allocation2 + $0x130] sm:$0xff]
    %v62 = vld [vmem:[#allocation2 + $0x138] sm:$0xff]
    %v63 = vld [vmem:[#allocation2 + $0x140] sm:$0xff]
    %v64 = vld [vmem:[#allocation2 + $0x148] sm:$0xff]
    %v65 = vld [vmem:[#allocation2 + $0x150] sm:$0xff]
    %v66 = vld [vmem:[#allocation2 + $0x158] sm:$0xff]
    %v67 = vld [vmem:[#allocation2 + $0x160] sm:$0xff]
    %v68 = vld [vmem:[#allocation2 + $0x168] sm:$0xff]
    %v69 = vld [vmem:[#allocation2 + $0x170] sm:$0xff]
    %v70 = vld [vmem:[#allocation2 + $0x178] sm:$0xff]
    %v71 = vld [vmem:[#allocation2 + $0x180] sm:$0xff]
    %v72 = vld [vmem:[#allocation2 + $0x188] sm:$0xff]
    %v73 = vld [vmem:[#allocation2 + $0x190] sm:$0xff]
    %v74 = vld [vmem:[#allocation2 + $0x198] sm:$0xff]
    %v75 = vld [vmem:[#allocation2 + $0x1a0] sm:$0xff]
    %v76 = vld [vmem:[#allocation2 + $0x1a8] sm:$0xff]
    %v77 = vld [vmem:[#allocation2 + $0x1b0] sm:$0xff]
    %v78 = vld [vmem:[#allocation2 + $0x1b8] sm:$0xff]
    %v79 = vld [vmem:[#allocation2 + $0x1c0] sm:$0xff]
    %v80 = vld [vmem:[#allocation2 + $0x1c8] sm:$0xff]
    %v81 = vld [vmem:[#allocation2 + $0x1d0] sm:$0xff]
    %v82 = vld [vmem:[#allocation2 + $0x1d8] sm:$0xff]
    %v83 = vld [vmem:[#allocation2 + $0x1e0] sm:$0xff]
    %v84 = vld [vmem:[#allocation2 + $0x1e8] sm:$0xff]
    %v85 = vld [vmem:[#allocation2 + $0x1f0] sm:$0xff]
    %v86 = vld [vmem:[#allocation2 + $0x1f8] sm:$0xff]
    %v87 = vld [vmem:[#allocation2 + $0x200] sm:$0xff]
    %v88 = vld [vmem:[#allocation2 + $0x208] sm:$0xff]
    %v89 = vld [vmem:[#allocation2 + $0x210] sm:$0xff]
    %v90 = vld [vmem:[#allocation2 + $0x218] sm:$0xff]
    %v91 = vld [vmem:[#allocation2 + $0x220] sm:$0xff]
    %v92 = vld [vmem:[#allocation2 + $0x228] sm:$0xff]
    %v93 = vld [vmem:[#allocation2 + $0x230] sm:$0xff]
    %v94 = vld [vmem:[#allocation2 + $0x238] sm:$0xff]
    %v95 = vld [vmem:[#allocation2 + $0x240] sm:$0xff]
    %v96 = vld [vmem:[#allocation2 + $0x248] sm:$0xff]
    %v97 = vld [vmem:[#allocation2 + $0x250] sm:$0xff]
    %v98 = vld [vmem:[#allocation2 + $0x258] sm:$0xff]
    %v99 = vld [vmem:[#allocation2 + $0x260] sm:$0xff]
    %v100 = vld [vmem:[#allocation2 + $0x268] sm:$0xff]
    %v101 = vld [vmem:[#allocation2 + $0x270] sm:$0xff]
    %v102 = vld [vmem:[#allocation2 + $0x278] sm:$0xff]
    %v103 = vld [vmem:[#allocation2 + $0x280] sm:$0xff]
    %v104 = vld [vmem:[#allocation2 + $0x288] sm:$0xff]
    %v105 = vld [vmem:[#allocation2 + $0x290] sm:$0xff]
    %v106 = vld [vmem:[#allocation2 + $0x298] sm:$0xff]
    %v107 = vld [vmem:[#allocation2 + $0x2a0] sm:$0xff]
    %v108 = vld [vmem:[#allocation2 + $0x2a8] sm:$0xff]
    %v109 = vld [vmem:[#allocation2 + $0x2b0] sm:$0xff]
    %v110 = vld [vmem:[#allocation2 + $0x2b8] sm:$0xff]
    %v111 = vld [vmem:[#allocation2 + $0x2c0] sm:$0xff]
    %v112 = vld [vmem:[#allocation2 + $0x2c8] sm:$0xff]
    %v113 = vld [vmem:[#allocation2 + $0x2d0] sm:$0xff]
    %v114 = vld [vmem:[#allocation2 + $0x2d8] sm:$0xff]
    %v115 = vld [vmem:[#allocation2 + $0x2e0] sm:$0xff]
    %v116 = vld [vmem:[#allocation2 + $0x2e8] sm:$0xff]
    %v117 = vld [vmem:[#allocation2 + $0x2f0] sm:$0xff]
    %v118 = vld [vmem:[#allocation2 + $0x2f8] sm:$0xff]
    %v119 = vld [vmem:[#allocation2 + $0x300] sm:$0xff]
    %v120 = vld [vmem:[#allocation2 + $0x308] sm:$0xff]
    %v121 = vld [vmem:[#allocation2 + $0x310] sm:$0xff]
    %v122 = vld [vmem:[#allocation2 + $0x318] sm:$0xff]
    %v123 = vld [vmem:[#allocation2 + $0x320] sm:$0xff]
    %v124 = vld [vmem:[#allocation2 + $0x328] sm:$0xff]
    %v125 = vld [vmem:[#allocation2 + $0x330] sm:$0xff]
    %v126 = vld [vmem:[#allocation2 + $0x338] sm:$0xff]
    %v127 = vld [vmem:[#allocation2 + $0x340] sm:$0xff]
    %v128 = vld [vmem:[#allocation2 + $0x348] sm:$0xff]
    %v129 = vld [vmem:[#allocation2 + $0x350] sm:$0xff]
    %v130 = vld [vmem:[#allocation2 + $0x358] sm:$0xff]
    %v131 = vld [vmem:[#allocation2 + $0x360] sm:$0xff]
    %v132 = vld [vmem:[#allocation2 + $0x368] sm:$0xff]
    %v133 = vld [vmem:[#allocation2 + $0x370] sm:$0xff]
    %v134 = vld [vmem:[#allocation2 + $0x378] sm:$0xff]
    %v135 = vld [vmem:[#allocation2 + $0x380] sm:$0xff]
    %v136 = vld [vmem:[#allocation2 + $0x388] sm:$0xff]
    %v137 = vld [vmem:[#allocation2 + $0x390] sm:$0xff]
    %v138 = vld [vmem:[#allocation2 + $0x398] sm:$0xff]
    %v139 = vld [vmem:[#allocation2 + $0x3a0] sm:$0xff]
    %v140 = vld [vmem:[#allocation2 + $0x3a8] sm:$0xff]
    %v141 = vld [vmem:[#allocation2 + $0x3b0] sm:$0xff]
    %v142 = vld [vmem:[#allocation2 + $0x3b8] sm:$0xff]
    %v143 = vld [vmem:[#allocation2 + $0x3c0] sm:$0xff]
    %v144 = vld [vmem:[#allocation2 + $0x3c8] sm:$0xff]
    %v145 = vld [vmem:[#allocation2 + $0x3d0] sm:$0xff]
    %v146 = vld [vmem:[#allocation2 + $0x3d8] sm:$0xff]
    %v147 = vld [vmem:[#allocation2 + $0x3e0] sm:$0xff]
    %v148 = vld [vmem:[#allocation2 + $0x3e8] sm:$0xff]
    %v149 = vld [vmem:[#allocation2 + $0x3f0] sm:$0xff]
    %v150 = vld [vmem:[#allocation2 + $0x3f8] sm:$0xff]
    %v151 = vmul.f32 %v23, %v23
    %v152 = vmul.f32 %v24, %v24
    %v153 = vmul.f32 %v25, %v25
    %v154 = vmul.f32 %v26, %v26
    %v155 = vmul.f32 %v27, %v27
    %v156 = vmul.f32 %v28, %v28
    %v157 = vmul.f32 %v29, %v29
    %v158 = vmul.f32 %v30, %v30
    %v159 = vmul.f32 %v31, %v31
    %v160 = vmul.f32 %v32, %v32
    %v161 = vmul.f32 %v33, %v33
    %v162 = vmul.f32 %v34, %v34
    %v163 = vmul.f32 %v35, %v35
    %v164 = vmul.f32 %v36, %v36
    %v165 = vmul.f32 %v37, %v37
    %v166 = vmul.f32 %v38, %v38
    %v167 = vmul.f32 %v39, %v39
    %v168 = vmul.f32 %v40, %v40
    %v169 = vmul.f32 %v41, %v41
    %v170 = vmul.f32 %v42, %v42
    %v171 = vmul.f32 %v43, %v43
    %v172 = vmul.f32 %v44, %v44
    %v173 = vmul.f32 %v45, %v45
    %v174 = vmul.f32 %v46, %v46
    %v175 = vmul.f32 %v47, %v47
    %v176 = vmul.f32 %v48, %v48
    %v177 = vmul.f32 %v49, %v49
    %v178 = vmul.f32 %v50, %v50
    %v179 = vmul.f32 %v51, %v51
    %v180 = vmul.f32 %v52, %v52
    %v181 = vmul.f32 %v53, %v53
    %v182 = vmul.f32 %v54, %v54
    %v183 = vmul.f32 %v55, %v55
    %v184 = vmul.f32 %v56, %v56
    %v185 = vmul.f32 %v57, %v57
    %v186 = vmul.f32 %v58, %v58
    %v187 = vmul.f32 %v59, %v59
    %v188 = vmul.f32 %v60, %v60
    %v189 = vmul.f32 %v61, %v61
    %v190 = vmul.f32 %v62, %v62
    %v191 = vmul.f32 %v63, %v63
    %v192 = vmul.f32 %v64, %v64
    %v193 = vmul.f32 %v65, %v65
    %v194 = vmul.f32 %v66, %v66
    %v195 = vmul.f32 %v67, %v67
    %v196 = vmul.f32 %v68, %v68
    %v197 = vmul.f32 %v69, %v69
    %v198 = vmul.f32 %v70, %v70
    %v199 = vmul.f32 %v71, %v71
    %v200 = vmul.f32 %v72, %v72
    %v201 = vmul.f32 %v73, %v73
    %v202 = vmul.f32 %v74, %v74
    %v203 = vmul.f32 %v75, %v75
    %v204 = vmul.f32 %v76, %v76
    %v205 = vmul.f32 %v77, %v77
    %v206 = vmul.f32 %v78, %v78
    %v207 = vmul.f32 %v79, %v79
    %v208 = vmul.f32 %v80, %v80
    %v209 = vmul.f32 %v81, %v81
    %v210 = vmul.f32 %v82, %v82
    %v211 = vmul.f32 %v83, %v83
    %v212 = vmul.f32 %v84, %v84
    %v213 = vmul.f32 %v85, %v85
    %v214 = vmul.f32 %v86, %v86
    %v215 = vmul.f32 %v87, %v87
    %v216 = vmul.f32 %v88, %v88
    %v217 = vmul.f32 %v89, %v89
    %v218 = vmul.f32 %v90, %v90
    %v219 = vmul.f32 %v91, %v91
    %v220 = vmul.f32 %v92, %v92
    %v221 = vmul.f32 %v93, %v93
    %v222 = vmul.f32 %v94, %v94
    %v223 = vmul.f32 %v95, %v95
    %v224 = vmul.f32 %v96, %v96
    %v225 = vmul.f32 %v97, %v97
    %v226 = vmul.f32 %v98, %v98
    %v227 = vmul.f32 %v99, %v99
    %v228 = vmul.f32 %v100, %v100
    %v229 = vmul.f32 %v101, %v101
    %v230 = vmul.f32 %v102, %v102
    %v231 = vmul.f32 %v103, %v103
    %v232 = vmul.f32 %v104, %v104
    %v233 = vmul.f32 %v105, %v105
    %v234 = vmul.f32 %v106, %v106
    %v235 = vmul.f32 %v107, %v107
    %v236 = vmul.f32 %v108, %v108
    %v237 = vmul.f32 %v109, %v109
    %v238 = vmul.f32 %v110, %v110
    %v239 = vmul.f32 %v111, %v111
    %v240 = vmul.f32 %v112, %v112
    %v241 = vmul.f32 %v113, %v113
    %v242 = vmul.f32 %v114, %v114
    %v243 = vmul.f32 %v115, %v115
    %v244 = vmul.f32 %v116, %v116
    %v245 = vmul.f32 %v117, %v117
    %v246 = vmul.f32 %v118, %v118
    %v247 = vmul.f32 %v119, %v119
    %v248 = vmul.f32 %v120, %v120
    %v249 = vmul.f32 %v121, %v121
    %v250 = vmul.f32 %v122, %v122
    %v251 = vmul.f32 %v123, %v123
    %v252 = vmul.f32 %v124, %v124
    %v253 = vmul.f32 %v125, %v125
    %v254 = vmul.f32 %v126, %v126
    %v255 = vmul.f32 %v127, %v127
    %v256 = vmul.f32 %v128, %v128
    %v257 = vmul.f32 %v129, %v129
    %v258 = vmul.f32 %v130, %v130
    %v259 = vmul.f32 %v131, %v131
    %v260 = vmul.f32 %v132, %v132
    %v261 = vmul.f32 %v133, %v133
    %v262 = vmul.f32 %v134, %v134
    %v263 = vmul.f32 %v135, %v135
    %v264 = vmul.f32 %v136, %v136
    %v265 = vmul.f32 %v137, %v137
    %v266 = vmul.f32 %v138, %v138
    %v267 = vmul.f32 %v139, %v139
    %v268 = vmul.f32 %v140, %v140
    %v269 = vmul.f32 %v141, %v141
    %v270 = vmul.f32 %v142, %v142
    %v271 = vmul.f32 %v143, %v143
    %v272 = vmul.f32 %v144, %v144
    %v273 = vmul.f32 %v145, %v145
    %v274 = vmul.f32 %v146, %v146
    %v275 = vmul.f32 %v147, %v147
    %v276 = vmul.f32 %v148, %v148
    %v277 = vmul.f32 %v149, %v149
    %v278 = vmul.f32 %v150, %v150
    %279 = vadd.xlane.f32.xlu0 %v151
    %v280 = vpop.xlane.xlu0 %279
    %281 = vadd.xlane.f32.xlu0 %v152
    %v282 = vpop.xlane.xlu0 %281
    %283 = vadd.xlane.f32.xlu0 %v153
    %v284 = vpop.xlane.xlu0 %283
    %285 = vadd.xlane.f32.xlu0 %v154
    %v286 = vpop.xlane.xlu0 %285
    %287 = vadd.xlane.f32.xlu0 %v155
    %v288 = vpop.xlane.xlu0 %287
    %289 = vadd.xlane.f32.xlu0 %v156
    %v290 = vpop.xlane.xlu0 %289
    %291 = vadd.xlane.f32.xlu0 %v157
    %v292 = vpop.xlane.xlu0 %291
    %293 = vadd.xlane.f32.xlu0 %v158
    %v294 = vpop.xlane.xlu0 %293
    %295 = vadd.xlane.f32.xlu0 %v159
    %v296 = vpop.xlane.xlu0 %295
    %297 = vadd.xlane.f32.xlu0 %v160
    %v298 = vpop.xlane.xlu0 %297
    %299 = vadd.xlane.f32.xlu0 %v161
    %v300 = vpop.xlane.xlu0 %299
    %301 = vadd.xlane.f32.xlu0 %v162
    %v302 = vpop.xlane.xlu0 %301
    %303 = vadd.xlane.f32.xlu0 %v163
    %v304 = vpop.xlane.xlu0 %303
    %305 = vadd.xlane.f32.xlu0 %v164
    %v306 = vpop.xlane.xlu0 %305
    %307 = vadd.xlane.f32.xlu0 %v165
    %v308 = vpop.xlane.xlu0 %307
    %309 = vadd.xlane.f32.xlu0 %v166
    %v310 = vpop.xlane.xlu0 %309
    %311 = vadd.xlane.f32.xlu0 %v167
    %v312 = vpop.xlane.xlu0 %311
    %313 = vadd.xlane.f32.xlu0 %v168
    %v314 = vpop.xlane.xlu0 %313
    %315 = vadd.xlane.f32.xlu0 %v169
    %v316 = vpop.xlane.xlu0 %315
    %317 = vadd.xlane.f32.xlu0 %v170
    %v318 = vpop.xlane.xlu0 %317
    %319 = vadd.xlane.f32.xlu0 %v171
    %v320 = vpop.xlane.xlu0 %319
    %321 = vadd.xlane.f32.xlu0 %v172
    %v322 = vpop.xlane.xlu0 %321
    %323 = vadd.xlane.f32.xlu0 %v173
    %v324 = vpop.xlane.xlu0 %323
    %325 = vadd.xlane.f32.xlu0 %v174
    %v326 = vpop.xlane.xlu0 %325
    %327 = vadd.xlane.f32.xlu0 %v175
    %v328 = vpop.xlane.xlu0 %327
    %329 = vadd.xlane.f32.xlu0 %v176
    %v330 = vpop.xlane.xlu0 %329
    %331 = vadd.xlane.f32.xlu0 %v177
    %v332 = vpop.xlane.xlu0 %331
    %333 = vadd.xlane.f32.xlu0 %v178
    %v334 = vpop.xlane.xlu0 %333
    %335 = vadd.xlane.f32.xlu0 %v179
    %v336 = vpop.xlane.xlu0 %335
    %337 = vadd.xlane.f32.xlu0 %v180
    %v338 = vpop.xlane.xlu0 %337
    %339 = vadd.xlane.f32.xlu0 %v181
    %v340 = vpop.xlane.xlu0 %339
    %341 = vadd.xlane.f32.xlu0 %v182
    %v342 = vpop.xlane.xlu0 %341
    %343 = vadd.xlane.f32.xlu0 %v183
    %v344 = vpop.xlane.xlu0 %343
    %345 = vadd.xlane.f32.xlu0 %v184
    %v346 = vpop.xlane.xlu0 %345
    %347 = vadd.xlane.f32.xlu0 %v185
    %v348 = vpop.xlane.xlu0 %347
    %349 = vadd.xlane.f32.xlu0 %v186
    %v350 = vpop.xlane.xlu0 %349
    %351 = vadd.xlane.f32.xlu0 %v187
    %v352 = vpop.xlane.xlu0 %351
    %353 = vadd.xlane.f32.xlu0 %v188
    %v354 = vpop.xlane.xlu0 %353
    %355 = vadd.xlane.f32.xlu0 %v189
    %v356 = vpop.xlane.xlu0 %355
    %357 = vadd.xlane.f32.xlu0 %v190
    %v358 = vpop.xlane.xlu0 %357
    %359 = vadd.xlane.f32.xlu0 %v191
    %v360 = vpop.xlane.xlu0 %359
    %361 = vadd.xlane.f32.xlu0 %v192
    %v362 = vpop.xlane.xlu0 %361
    %363 = vadd.xlane.f32.xlu0 %v193
    %v364 = vpop.xlane.xlu0 %363
    %365 = vadd.xlane.f32.xlu0 %v194
    %v366 = vpop.xlane.xlu0 %365
    %367 = vadd.xlane.f32.xlu0 %v195
    %v368 = vpop.xlane.xlu0 %367
    %369 = vadd.xlane.f32.xlu0 %v196
    %v370 = vpop.xlane.xlu0 %369
    %371 = vadd.xlane.f32.xlu0 %v197
    %v372 = vpop.xlane.xlu0 %371
    %373 = vadd.xlane.f32.xlu0 %v198
    %v374 = vpop.xlane.xlu0 %373
    %375 = vadd.xlane.f32.xlu0 %v199
    %v376 = vpop.xlane.xlu0 %375
    %377 = vadd.xlane.f32.xlu0 %v200
    %v378 = vpop.xlane.xlu0 %377
    %379 = vadd.xlane.f32.xlu0 %v201
    %v380 = vpop.xlane.xlu0 %379
    %381 = vadd.xlane.f32.xlu0 %v202
    %v382 = vpop.xlane.xlu0 %381
    %383 = vadd.xlane.f32.xlu0 %v203
    %v384 = vpop.xlane.xlu0 %383
    %385 = vadd.xlane.f32.xlu0 %v204
    %v386 = vpop.xlane.xlu0 %385
    %387 = vadd.xlane.f32.xlu0 %v205
    %v388 = vpop.xlane.xlu0 %387
    %389 = vadd.xlane.f32.xlu0 %v206
    %v390 = vpop.xlane.xlu0 %389
    %391 = vadd.xlane.f32.xlu0 %v207
    %v392 = vpop.xlane.xlu0 %391
    %393 = vadd.xlane.f32.xlu0 %v208
    %v394 = vpop.xlane.xlu0 %393
    %395 = vadd.xlane.f32.xlu0 %v209
    %v396 = vpop.xlane.xlu0 %395
    %397 = vadd.xlane.f32.xlu0 %v210
    %v398 = vpop.xlane.xlu0 %397
    %399 = vadd.xlane.f32.xlu0 %v211
    %v400 = vpop.xlane.xlu0 %399
    %401 = vadd.xlane.f32.xlu0 %v212
    %v402 = vpop.xlane.xlu0 %401
    %403 = vadd.xlane.f32.xlu0 %v213
    %v404 = vpop.xlane.xlu0 %403
    %405 = vadd.xlane.f32.xlu0 %v214
    %v406 = vpop.xlane.xlu0 %405
    %407 = vadd.xlane.f32.xlu0 %v215
    %v408 = vpop.xlane.xlu0 %407
    %409 = vadd.xlane.f32.xlu0 %v216
    %v410 = vpop.xlane.xlu0 %409
    %411 = vadd.xlane.f32.xlu0 %v217
    %v412 = vpop.xlane.xlu0 %411
    %413 = vadd.xlane.f32.xlu0 %v218
    %v414 = vpop.xlane.xlu0 %413
    %415 = vadd.xlane.f32.xlu0 %v219
    %v416 = vpop.xlane.xlu0 %415
    %417 = vadd.xlane.f32.xlu0 %v220
    %v418 = vpop.xlane.xlu0 %417
    %419 = vadd.xlane.f32.xlu0 %v221
    %v420 = vpop.xlane.xlu0 %419
    %421 = vadd.xlane.f32.xlu0 %v222
    %v422 = vpop.xlane.xlu0 %421
    %423 = vadd.xlane.f32.xlu0 %v223
    %v424 = vpop.xlane.xlu0 %423
    %425 = vadd.xlane.f32.xlu0 %v224
    %v426 = vpop.xlane.xlu0 %425
    %427 = vadd.xlane.f32.xlu0 %v225
    %v428 = vpop.xlane.xlu0 %427
    %429 = vadd.xlane.f32.xlu0 %v226
    %v430 = vpop.xlane.xlu0 %429
    %431 = vadd.xlane.f32.xlu0 %v227
    %v432 = vpop.xlane.xlu0 %431
    %433 = vadd.xlane.f32.xlu0 %v228
    %v434 = vpop.xlane.xlu0 %433
    %435 = vadd.xlane.f32.xlu0 %v229
    %v436 = vpop.xlane.xlu0 %435
    %437 = vadd.xlane.f32.xlu0 %v230
    %v438 = vpop.xlane.xlu0 %437
    %439 = vadd.xlane.f32.xlu0 %v231
    %v440 = vpop.xlane.xlu0 %439
    %441 = vadd.xlane.f32.xlu0 %v232
    %v442 = vpop.xlane.xlu0 %441
    %443 = vadd.xlane.f32.xlu0 %v233
    %v444 = vpop.xlane.xlu0 %443
    %445 = vadd.xlane.f32.xlu0 %v234
    %v446 = vpop.xlane.xlu0 %445
    %447 = vadd.xlane.f32.xlu0 %v235
    %v448 = vpop.xlane.xlu0 %447
    %449 = vadd.xlane.f32.xlu0 %v236
    %v450 = vpop.xlane.xlu0 %449
    %451 = vadd.xlane.f32.xlu0 %v237
    %v452 = vpop.xlane.xlu0 %451
    %453 = vadd.xlane.f32.xlu0 %v238
    %v454 = vpop.xlane.xlu0 %453
    %455 = vadd.xlane.f32.xlu0 %v239
    %v456 = vpop.xlane.xlu0 %455
    %457 = vadd.xlane.f32.xlu0 %v240
    %v458 = vpop.xlane.xlu0 %457
    %459 = vadd.xlane.f32.xlu0 %v241
    %v460 = vpop.xlane.xlu0 %459
    %461 = vadd.xlane.f32.xlu0 %v242
    %v462 = vpop.xlane.xlu0 %461
    %463 = vadd.xlane.f32.xlu0 %v243
    %v464 = vpop.xlane.xlu0 %463
    %465 = vadd.xlane.f32.xlu0 %v244
    %v466 = vpop.xlane.xlu0 %465
    %467 = vadd.xlane.f32.xlu0 %v245
    %v468 = vpop.xlane.xlu0 %467
    %469 = vadd.xlane.f32.xlu0 %v246
    %v470 = vpop.xlane.xlu0 %469
    %471 = vadd.xlane.f32.xlu0 %v247
    %v472 = vpop.xlane.xlu0 %471
    %473 = vadd.xlane.f32.xlu0 %v248
    %v474 = vpop.xlane.xlu0 %473
    %475 = vadd.xlane.f32.xlu0 %v249
    %v476 = vpop.xlane.xlu0 %475
    %477 = vadd.xlane.f32.xlu0 %v250
    %v478 = vpop.xlane.xlu0 %477
    %479 = vadd.xlane.f32.xlu0 %v251
    %v480 = vpop.xlane.xlu0 %479
    %481 = vadd.xlane.f32.xlu0 %v252
    %v482 = vpop.xlane.xlu0 %481
    %483 = vadd.xlane.f32.xlu0 %v253
    %v484 = vpop.xlane.xlu0 %483
    %485 = vadd.xlane.f32.xlu0 %v254
    %v486 = vpop.xlane.xlu0 %485
    %487 = vadd.xlane.f32.xlu0 %v255
    %v488 = vpop.xlane.xlu0 %487
    %489 = vadd.xlane.f32.xlu0 %v256
    %v490 = vpop.xlane.xlu0 %489
    %491 = vadd.xlane.f32.xlu0 %v257
    %v492 = vpop.xlane.xlu0 %491
    %493 = vadd.xlane.f32.xlu0 %v258
    %v494 = vpop.xlane.xlu0 %493
    %495 = vadd.xlane.f32.xlu0 %v259
    %v496 = vpop.xlane.xlu0 %495
    %497 = vadd.xlane.f32.xlu0 %v260
    %v498 = vpop.xlane.xlu0 %497
    %499 = vadd.xlane.f32.xlu0 %v261
    %v500 = vpop.xlane.xlu0 %499
    %501 = vadd.xlane.f32.xlu0 %v262
    %v502 = vpop.xlane.xlu0 %501
    %503 = vadd.xlane.f32.xlu0 %v263
    %v504 = vpop.xlane.xlu0 %503
    %505 = vadd.xlane.f32.xlu0 %v264
    %v506 = vpop.xlane.xlu0 %505
    %507 = vadd.xlane.f32.xlu0 %v265
    %v508 = vpop.xlane.xlu0 %507
    %509 = vadd.xlane.f32.xlu0 %v266
    %v510 = vpop.xlane.xlu0 %509
    %511 = vadd.xlane.f32.xlu0 %v267
    %v512 = vpop.xlane.xlu0 %511
    %513 = vadd.xlane.f32.xlu0 %v268
    %v514 = vpop.xlane.xlu0 %513
    %515 = vadd.xlane.f32.xlu0 %v269
    %v516 = vpop.xlane.xlu0 %515
    %517 = vadd.xlane.f32.xlu0 %v270
    %v518 = vpop.xlane.xlu0 %517
    %519 = vadd.xlane.f32.xlu0 %v271
    %v520 = vpop.xlane.xlu0 %519
    %521 = vadd.xlane.f32.xlu0 %v272
    %v522 = vpop.xlane.xlu0 %521
    %523 = vadd.xlane.f32.xlu0 %v273
    %v524 = vpop.xlane.xlu0 %523
    %525 = vadd.xlane.f32.xlu0 %v274
    %v526 = vpop.xlane.xlu0 %525
    %527 = vadd.xlane.f32.xlu0 %v275
    %v528 = vpop.xlane.xlu0 %527
    %529 = vadd.xlane.f32.xlu0 %v276
    %v530 = vpop.xlane.xlu0 %529
    %531 = vadd.xlane.f32.xlu0 %v277
    %v532 = vpop.xlane.xlu0 %531
    %533 = vadd.xlane.f32.xlu0 %v278
    %v534 = vpop.xlane.xlu0 %533
    %v535 = vadd.f32 %v280, 1e-12
    %v536 = vadd.f32 %v282, 1e-12
    %v537 = vadd.f32 %v284, 1e-12
    %v538 = vadd.f32 %v286, 1e-12
    %v539 = vadd.f32 %v288, 1e-12
    %v540 = vadd.f32 %v290, 1e-12
    %v541 = vadd.f32 %v292, 1e-12
    %v542 = vadd.f32 %v294, 1e-12
    %v543 = vadd.f32 %v296, 1e-12
    %v544 = vadd.f32 %v298, 1e-12
    %v545 = vadd.f32 %v300, 1e-12
    %v546 = vadd.f32 %v302, 1e-12
    %v547 = vadd.f32 %v304, 1e-12
    %v548 = vadd.f32 %v306, 1e-12
    %v549 = vadd.f32 %v308, 1e-12
    %v550 = vadd.f32 %v310, 1e-12
    %v551 = vadd.f32 %v312, 1e-12
    %v552 = vadd.f32 %v314, 1e-12
    %v553 = vadd.f32 %v316, 1e-12
    %v554 = vadd.f32 %v318, 1e-12
    %v555 = vadd.f32 %v320, 1e-12
    %v556 = vadd.f32 %v322, 1e-12
    %v557 = vadd.f32 %v324, 1e-12
    %v558 = vadd.f32 %v326, 1e-12
    %v559 = vadd.f32 %v328, 1e-12
    %v560 = vadd.f32 %v330, 1e-12
    %v561 = vadd.f32 %v332, 1e-12
    %v562 = vadd.f32 %v334, 1e-12
    %v563 = vadd.f32 %v336, 1e-12
    %v564 = vadd.f32 %v338, 1e-12
    %v565 = vadd.f32 %v340, 1e-12
    %v566 = vadd.f32 %v342, 1e-12
    %v567 = vadd.f32 %v344, 1e-12
    %v568 = vadd.f32 %v346, 1e-12
    %v569 = vadd.f32 %v348, 1e-12
    %v570 = vadd.f32 %v350, 1e-12
    %v571 = vadd.f32 %v352, 1e-12
    %v572 = vadd.f32 %v354, 1e-12
    %v573 = vadd.f32 %v356, 1e-12
    %v574 = vadd.f32 %v358, 1e-12
    %v575 = vadd.f32 %v360, 1e-12
    %v576 = vadd.f32 %v362, 1e-12
    %v577 = vadd.f32 %v364, 1e-12
    %v578 = vadd.f32 %v366, 1e-12
    %v579 = vadd.f32 %v368, 1e-12
    %v580 = vadd.f32 %v370, 1e-12
    %v581 = vadd.f32 %v372, 1e-12
    %v582 = vadd.f32 %v374, 1e-12
    %v583 = vadd.f32 %v376, 1e-12
    %v584 = vadd.f32 %v378, 1e-12
    %v585 = vadd.f32 %v380, 1e-12
    %v586 = vadd.f32 %v382, 1e-12
    %v587 = vadd.f32 %v384, 1e-12
    %v588 = vadd.f32 %v386, 1e-12
    %v589 = vadd.f32 %v388, 1e-12
    %v590 = vadd.f32 %v390, 1e-12
    %v591 = vadd.f32 %v392, 1e-12
    %v592 = vadd.f32 %v394, 1e-12
    %v593 = vadd.f32 %v396, 1e-12
    %v594 = vadd.f32 %v398, 1e-12
    %v595 = vadd.f32 %v400, 1e-12
    %v596 = vadd.f32 %v402, 1e-12
    %v597 = vadd.f32 %v404, 1e-12
    %v598 = vadd.f32 %v406, 1e-12
    %v599 = vadd.f32 %v408, 1e-12
    %v600 = vadd.f32 %v410, 1e-12
    %v601 = vadd.f32 %v412, 1e-12
    %v602 = vadd.f32 %v414, 1e-12
    %v603 = vadd.f32 %v416, 1e-12
    %v604 = vadd.f32 %v418, 1e-12
    %v605 = vadd.f32 %v420, 1e-12
    %v606 = vadd.f32 %v422, 1e-12
    %v607 = vadd.f32 %v424, 1e-12
    %v608 = vadd.f32 %v426, 1e-12
    %v609 = vadd.f32 %v428, 1e-12
    %v610 = vadd.f32 %v430, 1e-12
    %v611 = vadd.f32 %v432, 1e-12
    %v612 = vadd.f32 %v434, 1e-12
    %v613 = vadd.f32 %v436, 1e-12
    %v614 = vadd.f32 %v438, 1e-12
    %v615 = vadd.f32 %v440, 1e-12
    %v616 = vadd.f32 %v442, 1e-12
    %v617 = vadd.f32 %v444, 1e-12
    %v618 = vadd.f32 %v446, 1e-12
    %v619 = vadd.f32 %v448, 1e-12
    %v620 = vadd.f32 %v450, 1e-12
    %v621 = vadd.f32 %v452, 1e-12
    %v622 = vadd.f32 %v454, 1e-12
    %v623 = vadd.f32 %v456, 1e-12
    %v624 = vadd.f32 %v458, 1e-12
    %v625 = vadd.f32 %v460, 1e-12
    %v626 = vadd.f32 %v462, 1e-12
    %v627 = vadd.f32 %v464, 1e-12
    %v628 = vadd.f32 %v466, 1e-12
    %v629 = vadd.f32 %v468, 1e-12
    %v630 = vadd.f32 %v470, 1e-12
    %v631 = vadd.f32 %v472, 1e-12
    %v632 = vadd.f32 %v474, 1e-12
    %v633 = vadd.f32 %v476, 1e-12
    %v634 = vadd.f32 %v478, 1e-12
    %v635 = vadd.f32 %v480, 1e-12
    %v636 = vadd.f32 %v482, 1e-12
    %v637 = vadd.f32 %v484, 1e-12
    %v638 = vadd.f32 %v486, 1e-12
    %v639 = vadd.f32 %v488, 1e-12
    %v640 = vadd.f32 %v490, 1e-12
    %v641 = vadd.f32 %v492, 1e-12
    %v642 = vadd.f32 %v494, 1e-12
    %v643 = vadd.f32 %v496, 1e-12
    %v644 = vadd.f32 %v498, 1e-12
    %v645 = vadd.f32 %v500, 1e-12
    %v646 = vadd.f32 %v502, 1e-12
    %v647 = vadd.f32 %v504, 1e-12
    %v648 = vadd.f32 %v506, 1e-12
    %v649 = vadd.f32 %v508, 1e-12
    %v650 = vadd.f32 %v510, 1e-12
    %v651 = vadd.f32 %v512, 1e-12
    %v652 = vadd.f32 %v514, 1e-12
    %v653 = vadd.f32 %v516, 1e-12
    %v654 = vadd.f32 %v518, 1e-12
    %v655 = vadd.f32 %v520, 1e-12
    %v656 = vadd.f32 %v522, 1e-12
    %v657 = vadd.f32 %v524, 1e-12
    %v658 = vadd.f32 %v526, 1e-12
    %v659 = vadd.f32 %v528, 1e-12
    %v660 = vadd.f32 %v530, 1e-12
    %v661 = vadd.f32 %v532, 1e-12
    %v662 = vadd.f32 %v534, 1e-12
    %v663 = vrsqrt.pop %v535
    %v664 = vrsqrt.pop %v536
    %v665 = vrsqrt.pop %v537
    %v666 = vrsqrt.pop %v538
    %v667 = vrsqrt.pop %v539
    %v668 = vrsqrt.pop %v540
    %v669 = vrsqrt.pop %v541
    %v670 = vrsqrt.pop %v542
    %v671 = vrsqrt.pop %v543
    %v672 = vrsqrt.pop %v544
    %v673 = vrsqrt.pop %v545
    %v674 = vrsqrt.pop %v546
    %v675 = vrsqrt.pop %v547
    %v676 = vrsqrt.pop %v548
    %v677 = vrsqrt.pop %v549
    %v678 = vrsqrt.pop %v550
    %v679 = vrsqrt.pop %v551
    %v680 = vrsqrt.pop %v552
    %v681 = vrsqrt.pop %v553
    %v682 = vrsqrt.pop %v554
    %v683 = vrsqrt.pop %v555
    %v684 = vrsqrt.pop %v556
    %v685 = vrsqrt.pop %v557
    %v686 = vrsqrt.pop %v558
    %v687 = vrsqrt.pop %v559
    %v688 = vrsqrt.pop %v560
    %v689 = vrsqrt.pop %v561
    %v690 = vrsqrt.pop %v562
    %v691 = vrsqrt.pop %v563
    %v692 = vrsqrt.pop %v564
    %v693 = vrsqrt.pop %v565
    %v694 = vrsqrt.pop %v566
    %v695 = vrsqrt.pop %v567
    %v696 = vrsqrt.pop %v568
    %v697 = vrsqrt.pop %v569
    %v698 = vrsqrt.pop %v570
    %v699 = vrsqrt.pop %v571
    %v700 = vrsqrt.pop %v572
    %v701 = vrsqrt.pop %v573
    %v702 = vrsqrt.pop %v574
    %v703 = vrsqrt.pop %v575
    %v704 = vrsqrt.pop %v576
    %v705 = vrsqrt.pop %v577
    %v706 = vrsqrt.pop %v578
    %v707 = vrsqrt.pop %v579
    %v708 = vrsqrt.pop %v580
    %v709 = vrsqrt.pop %v581
    %v710 = vrsqrt.pop %v582
    %v711 = vrsqrt.pop %v583
    %v712 = vrsqrt.pop %v584
    %v713 = vrsqrt.pop %v585
    %v714 = vrsqrt.pop %v586
    %v715 = vrsqrt.pop %v587
    %v716 = vrsqrt.pop %v588
    %v717 = vrsqrt.pop %v589
    %v718 = vrsqrt.pop %v590
    %v719 = vrsqrt.pop %v591
    %v720 = vrsqrt.pop %v592
    %v721 = vrsqrt.pop %v593
    %v722 = vrsqrt.pop %v594
    %v723 = vrsqrt.pop %v595
    %v724 = vrsqrt.pop %v596
    %v725 = vrsqrt.pop %v597
    %v726 = vrsqrt.pop %v598
    %v727 = vrsqrt.pop %v599
    %v728 = vrsqrt.pop %v600
    %v729 = vrsqrt.pop %v601
    %v730 = vrsqrt.pop %v602
    %v731 = vrsqrt.pop %v603
    %v732 = vrsqrt.pop %v604
    %v733 = vrsqrt.pop %v605
    %v734 = vrsqrt.pop %v606
    %v735 = vrsqrt.pop %v607
    %v736 = vrsqrt.pop %v608
    %v737 = vrsqrt.pop %v609
    %v738 = vrsqrt.pop %v610
    %v739 = vrsqrt.pop %v611
    %v740 = vrsqrt.pop %v612
    %v741 = vrsqrt.pop %v613
    %v742 = vrsqrt.pop %v614
    %v743 = vrsqrt.pop %v615
    %v744 = vrsqrt.pop %v616
    %v745 = vrsqrt.pop %v617
    %v746 = vrsqrt.pop %v618
    %v747 = vrsqrt.pop %v619
    %v748 = vrsqrt.pop %v620
    %v749 = vrsqrt.pop %v621
    %v750 = vrsqrt.pop %v622
    %v751 = vrsqrt.pop %v623
    %v752 = vrsqrt.pop %v624
    %v753 = vrsqrt.pop %v625
    %v754 = vrsqrt.pop %v626
    %v755 = vrsqrt.pop %v627
    %v756 = vrsqrt.pop %v628
    %v757 = vrsqrt.pop %v629
    %v758 = vrsqrt.pop %v630
    %v759 = vrsqrt.pop %v631
    %v760 = vrsqrt.pop %v632
    %v761 = vrsqrt.pop %v633
    %v762 = vrsqrt.pop %v634
    %v763 = vrsqrt.pop %v635
    %v764 = vrsqrt.pop %v636
    %v765 = vrsqrt.pop %v637
    %v766 = vrsqrt.pop %v638
    %v767 = vrsqrt.pop %v639
    %v768 = vrsqrt.pop %v640
    %v769 = vrsqrt.pop %v641
    %v770 = vrsqrt.pop %v642
    %v771 = vrsqrt.pop %v643
    %v772 = vrsqrt.pop %v644
    %v773 = vrsqrt.pop %v645
    %v774 = vrsqrt.pop %v646
    %v775 = vrsqrt.pop %v647
    %v776 = vrsqrt.pop %v648
    %v777 = vrsqrt.pop %v649
    %v778 = vrsqrt.pop %v650
    %v779 = vrsqrt.pop %v651
    %v780 = vrsqrt.pop %v652
    %v781 = vrsqrt.pop %v653
    %v782 = vrsqrt.pop %v654
    %v783 = vrsqrt.pop %v655
    %v784 = vrsqrt.pop %v656
    %v785 = vrsqrt.pop %v657
    %v786 = vrsqrt.pop %v658
    %v787 = vrsqrt.pop %v659
    %v788 = vrsqrt.pop %v660
    %v789 = vrsqrt.pop %v661
    %v790 = vrsqrt.pop %v662
    %v791 = vmul.f32 %v23, %v663
    %v792 = vmul.f32 %v24, %v664
    %v793 = vmul.f32 %v25, %v665
    %v794 = vmul.f32 %v26, %v666
    %v795 = vmul.f32 %v27, %v667
    %v796 = vmul.f32 %v28, %v668
    %v797 = vmul.f32 %v29, %v669
    %v798 = vmul.f32 %v30, %v670
    %v799 = vmul.f32 %v31, %v671
    %v800 = vmul.f32 %v32, %v672
    %v801 = vmul.f32 %v33, %v673
    %v802 = vmul.f32 %v34, %v674
    %v803 = vmul.f32 %v35, %v675
    %v804 = vmul.f32 %v36, %v676
    %v805 = vmul.f32 %v37, %v677
    %v806 = vmul.f32 %v38, %v678
    %v807 = vmul.f32 %v39, %v679
    %v808 = vmul.f32 %v40, %v680
    %v809 = vmul.f32 %v41, %v681
    %v810 = vmul.f32 %v42, %v682
    %v811 = vmul.f32 %v43, %v683
    %v812 = vmul.f32 %v44, %v684
    %v813 = vmul.f32 %v45, %v685
    %v814 = vmul.f32 %v46, %v686
    %v815 = vmul.f32 %v47, %v687
    %v816 = vmul.f32 %v48, %v688
    %v817 = vmul.f32 %v49, %v689
    %v818 = vmul.f32 %v50, %v690
    %v819 = vmul.f32 %v51, %v691
    %v820 = vmul.f32 %v52, %v692
    %v821 = vmul.f32 %v53, %v693
    %v822 = vmul.f32 %v54, %v694
    %v823 = vmul.f32 %v55, %v695
    %v824 = vmul.f32 %v56, %v696
    %v825 = vmul.f32 %v57, %v697
    %v826 = vmul.f32 %v58, %v698
    %v827 = vmul.f32 %v59, %v699
    %v828 = vmul.f32 %v60, %v700
    %v829 = vmul.f32 %v61, %v701
    %v830 = vmul.f32 %v62, %v702
    %v831 = vmul.f32 %v63, %v703
    %v832 = vmul.f32 %v64, %v704
    %v833 = vmul.f32 %v65, %v705
    %v834 = vmul.f32 %v66, %v706
    %v835 = vmul.f32 %v67, %v707
    %v836 = vmul.f32 %v68, %v708
    %v837 = vmul.f32 %v69, %v709
    %v838 = vmul.f32 %v70, %v710
    %v839 = vmul.f32 %v71, %v711
    %v840 = vmul.f32 %v72, %v712
    %v841 = vmul.f32 %v73, %v713
    %v842 = vmul.f32 %v74, %v714
    %v843 = vmul.f32 %v75, %v715
    %v844 = vmul.f32 %v76, %v716
    %v845 = vmul.f32 %v77, %v717
    %v846 = vmul.f32 %v78, %v718
    %v847 = vmul.f32 %v79, %v719
    %v848 = vmul.f32 %v80, %v720
    %v849 = vmul.f32 %v81, %v721
    %v850 = vmul.f32 %v82, %v722
    %v851 = vmul.f32 %v83, %v723
    %v852 = vmul.f32 %v84, %v724
    %v853 = vmul.f32 %v85, %v725
    %v854 = vmul.f32 %v86, %v726
    %v855 = vmul.f32 %v87, %v727
    %v856 = vmul.f32 %v88, %v728
    %v857 = vmul.f32 %v89, %v729
    %v858 = vmul.f32 %v90, %v730
    %v859 = vmul.f32 %v91, %v731
    %v860 = vmul.f32 %v92, %v732
    %v861 = vmul.f32 %v93, %v733
    %v862 = vmul.f32 %v94, %v734
    %v863 = vmul.f32 %v95, %v735
    %v864 = vmul.f32 %v96, %v736
    %v865 = vmul.f32 %v97, %v737
    %v866 = vmul.f32 %v98, %v738
    %v867 = vmul.f32 %v99, %v739
    %v868 = vmul.f32 %v100, %v740
    %v869 = vmul.f32 %v101, %v741
    %v870 = vmul.f32 %v102, %v742
    %v871 = vmul.f32 %v103, %v743
    %v872 = vmul.f32 %v104, %v744
    %v873 = vmul.f32 %v105, %v745
    %v874 = vmul.f32 %v106, %v746
    %v875 = vmul.f32 %v107, %v747
    %v876 = vmul.f32 %v108, %v748
    %v877 = vmul.f32 %v109, %v749
    %v878 = vmul.f32 %v110, %v750
    %v879 = vmul.f32 %v111, %v751
    %v880 = vmul.f32 %v112, %v752
    %v881 = vmul.f32 %v113, %v753
    %v882 = vmul.f32 %v114, %v754
    %v883 = vmul.f32 %v115, %v755
    %v884 = vmul.f32 %v116, %v756
    %v885 = vmul.f32 %v117, %v757
    %v886 = vmul.f32 %v118, %v758
    %v887 = vmul.f32 %v119, %v759
    %v888 = vmul.f32 %v120, %v760
    %v889 = vmul.f32 %v121, %v761
    %v890 = vmul.f32 %v122, %v762
    %v891 = vmul.f32 %v123, %v763
    %v892 = vmul.f32 %v124, %v764
    %v893 = vmul.f32 %v125, %v765
    %v894 = vmul.f32 %v126, %v766
    %v895 = vmul.f32 %v127, %v767
    %v896 = vmul.f32 %v128, %v768
    %v897 = vmul.f32 %v129, %v769
    %v898 = vmul.f32 %v130, %v770
    %v899 = vmul.f32 %v131, %v771
    %v900 = vmul.f32 %v132, %v772
    %v901 = vmul.f32 %v133, %v773
    %v902 = vmul.f32 %v134, %v774
    %v903 = vmul.f32 %v135, %v775
    %v904 = vmul.f32 %v136, %v776
    %v905 = vmul.f32 %v137, %v777
    %v906 = vmul.f32 %v138, %v778
    %v907 = vmul.f32 %v139, %v779
    %v908 = vmul.f32 %v140, %v780
    %v909 = vmul.f32 %v141, %v781
    %v910 = vmul.f32 %v142, %v782
    %v911 = vmul.f32 %v143, %v783
    %v912 = vmul.f32 %v144, %v784
    %v913 = vmul.f32 %v145, %v785
    %v914 = vmul.f32 %v146, %v786
    %v915 = vmul.f32 %v147, %v787
    %v916 = vmul.f32 %v148, %v788
    %v917 = vmul.f32 %v149, %v789
    %v918 = vmul.f32 %v150, %v790
    %919 = vst [vmem:[#allocation5] sm:$0xff] %v791
    %920 = vst [vmem:[#allocation5 + $0x8] sm:$0xff] %v792
    %921 = vst [vmem:[#allocation5 + $0x10] sm:$0xff] %v793
    %922 = vst [vmem:[#allocation5 + $0x18] sm:$0xff] %v794
    %923 = vst [vmem:[#allocation5 + $0x20] sm:$0xff] %v795
    %924 = vst [vmem:[#allocation5 + $0x28] sm:$0xff] %v796
    %925 = vst [vmem:[#allocation5 + $0x30] sm:$0xff] %v797
    %926 = vst [vmem:[#allocation5 + $0x38] sm:$0xff] %v798
    %927 = vst [vmem:[#allocation5 + $0x40] sm:$0xff] %v799
    %928 = vst [vmem:[#allocation5 + $0x48] sm:$0xff] %v800
    %929 = vst [vmem:[#allocation5 + $0x50] sm:$0xff] %v801
    %930 = vst [vmem:[#allocation5 + $0x58] sm:$0xff] %v802
    %931 = vst [vmem:[#allocation5 + $0x60] sm:$0xff] %v803
    %932 = vst [vmem:[#allocation5 + $0x68] sm:$0xff] %v804
    %933 = vst [vmem:[#allocation5 + $0x70] sm:$0xff] %v805
    %934 = vst [vmem:[#allocation5 + $0x78] sm:$0xff] %v806
    %935 = vst [vmem:[#allocation5 + $0x80] sm:$0xff] %v807
    %936 = vst [vmem:[#allocation5 + $0x88] sm:$0xff] %v808
    %937 = vst [vmem:[#allocation5 + $0x90] sm:$0xff] %v809
    %938 = vst [vmem:[#allocation5 + $0x98] sm:$0xff] %v810
    %939 = vst [vmem:[#allocation5 + $0xa0] sm:$0xff] %v811
    %940 = vst [vmem:[#allocation5 + $0xa8] sm:$0xff] %v812
    %941 = vst [vmem:[#allocation5 + $0xb0] sm:$0xff] %v813
    %942 = vst [vmem:[#allocation5 + $0xb8] sm:$0xff] %v814
    %943 = vst [vmem:[#allocation5 + $0xc0] sm:$0xff] %v815
    %944 = vst [vmem:[#allocation5 + $0xc8] sm:$0xff] %v816
    %945 = vst [vmem:[#allocation5 + $0xd0] sm:$0xff] %v817
    %946 = vst [vmem:[#allocation5 + $0xd8] sm:$0xff] %v818
    %947 = vst [vmem:[#allocation5 + $0xe0] sm:$0xff] %v819
    %948 = vst [vmem:[#allocation5 + $0xe8] sm:$0xff] %v820
    %949 = vst [vmem:[#allocation5 + $0xf0] sm:$0xff] %v821
    %950 = vst [vmem:[#allocation5 + $0xf8] sm:$0xff] %v822
    %951 = vst [vmem:[#allocation5 + $0x100] sm:$0xff] %v823
    %952 = vst [vmem:[#allocation5 + $0x108] sm:$0xff] %v824
    %953 = vst [vmem:[#allocation5 + $0x110] sm:$0xff] %v825
    %954 = vst [vmem:[#allocation5 + $0x118] sm:$0xff] %v826
    %955 = vst [vmem:[#allocation5 + $0x120] sm:$0xff] %v827
    %956 = vst [vmem:[#allocation5 + $0x128] sm:$0xff] %v828
    %957 = vst [vmem:[#allocation5 + $0x130] sm:$0xff] %v829
    %958 = vst [vmem:[#allocation5 + $0x138] sm:$0xff] %v830
    %959 = vst [vmem:[#allocation5 + $0x140] sm:$0xff] %v831
    %960 = vst [vmem:[#allocation5 + $0x148] sm:$0xff] %v832
    %961 = vst [vmem:[#allocation5 + $0x150] sm:$0xff] %v833
    %962 = vst [vmem:[#allocation5 + $0x158] sm:$0xff] %v834
    %963 = vst [vmem:[#allocation5 + $0x160] sm:$0xff] %v835
    %964 = vst [vmem:[#allocation5 + $0x168] sm:$0xff] %v836
    %965 = vst [vmem:[#allocation5 + $0x170] sm:$0xff] %v837
    %966 = vst [vmem:[#allocation5 + $0x178] sm:$0xff] %v838
    %967 = vst [vmem:[#allocation5 + $0x180] sm:$0xff] %v839
    %968 = vst [vmem:[#allocation5 + $0x188] sm:$0xff] %v840
    %969 = vst [vmem:[#allocation5 + $0x190] sm:$0xff] %v841
    %970 = vst [vmem:[#allocation5 + $0x198] sm:$0xff] %v842
    %971 = vst [vmem:[#allocation5 + $0x1a0] sm:$0xff] %v843
    %972 = vst [vmem:[#allocation5 + $0x1a8] sm:$0xff] %v844
    %973 = vst [vmem:[#allocation5 + $0x1b0] sm:$0xff] %v845
    %974 = vst [vmem:[#allocation5 + $0x1b8] sm:$0xff] %v846
    %975 = vst [vmem:[#allocation5 + $0x1c0] sm:$0xff] %v847
    %976 = vst [vmem:[#allocation5 + $0x1c8] sm:$0xff] %v848
    %977 = vst [vmem:[#allocation5 + $0x1d0] sm:$0xff] %v849
    %978 = vst [vmem:[#allocation5 + $0x1d8] sm:$0xff] %v850
    %979 = vst [vmem:[#allocation5 + $0x1e0] sm:$0xff] %v851
    %980 = vst [vmem:[#allocation5 + $0x1e8] sm:$0xff] %v852
    %981 = vst [vmem:[#allocation5 + $0x1f0] sm:$0xff] %v853
    %982 = vst [vmem:[#allocation5 + $0x1f8] sm:$0xff] %v854
    %983 = vst [vmem:[#allocation5 + $0x200] sm:$0xff] %v855
    %984 = vst [vmem:[#allocation5 + $0x208] sm:$0xff] %v856
    %985 = vst [vmem:[#allocation5 + $0x210] sm:$0xff] %v857
    %986 = vst [vmem:[#allocation5 + $0x218] sm:$0xff] %v858
    %987 = vst [vmem:[#allocation5 + $0x220] sm:$0xff] %v859
    %988 = vst [vmem:[#allocation5 + $0x228] sm:$0xff] %v860
    %989 = vst [vmem:[#allocation5 + $0x230] sm:$0xff] %v861
    %990 = vst [vmem:[#allocation5 + $0x238] sm:$0xff] %v862
    %991 = vst [vmem:[#allocation5 + $0x240] sm:$0xff] %v863
    %992 = vst [vmem:[#allocation5 + $0x248] sm:$0xff] %v864
    %993 = vst [vmem:[#allocation5 + $0x250] sm:$0xff] %v865
    %994 = vst [vmem:[#allocation5 + $0x258] sm:$0xff] %v866
    %995 = vst [vmem:[#allocation5 + $0x260] sm:$0xff] %v867
    %996 = vst [vmem:[#allocation5 + $0x268] sm:$0xff] %v868
    %997 = vst [vmem:[#allocation5 + $0x270] sm:$0xff] %v869
    %998 = vst [vmem:[#allocation5 + $0x278] sm:$0xff] %v870
    %999 = vst [vmem:[#allocation5 + $0x280] sm:$0xff] %v871
    %1000 = vst [vmem:[#allocation5 + $0x288] sm:$0xff] %v872
    %1001 = vst [vmem:[#allocation5 + $0x290] sm:$0xff] %v873
    %1002 = vst [vmem:[#allocation5 + $0x298] sm:$0xff] %v874
    %1003 = vst [vmem:[#allocation5 + $0x2a0] sm:$0xff] %v875
    %1004 = vst [vmem:[#allocation5 + $0x2a8] sm:$0xff] %v876
    %1005 = vst [vmem:[#allocation5 + $0x2b0] sm:$0xff] %v877
    %1006 = vst [vmem:[#allocation5 + $0x2b8] sm:$0xff] %v878
    %1007 = vst [vmem:[#allocation5 + $0x2c0] sm:$0xff] %v879
    %1008 = vst [vmem:[#allocation5 + $0x2c8] sm:$0xff] %v880
    %1009 = vst [vmem:[#allocation5 + $0x2d0] sm:$0xff] %v881
    %1010 = vst [vmem:[#allocation5 + $0x2d8] sm:$0xff] %v882
    %1011 = vst [vmem:[#allocation5 + $0x2e0] sm:$0xff] %v883
    %1012 = vst [vmem:[#allocation5 + $0x2e8] sm:$0xff] %v884
    %1013 = vst [vmem:[#allocation5 + $0x2f0] sm:$0xff] %v885
    %1014 = vst [vmem:[#allocation5 + $0x2f8] sm:$0xff] %v886
    %1015 = vst [vmem:[#allocation5 + $0x300] sm:$0xff] %v887
    %1016 = vst [vmem:[#allocation5 + $0x308] sm:$0xff] %v888
    %1017 = vst [vmem:[#allocation5 + $0x310] sm:$0xff] %v889
    %1018 = vst [vmem:[#allocation5 + $0x318] sm:$0xff] %v890
    %1019 = vst [vmem:[#allocation5 + $0x320] sm:$0xff] %v891
    %1020 = vst [vmem:[#allocation5 + $0x328] sm:$0xff] %v892
    %1021 = vst [vmem:[#allocation5 + $0x330] sm:$0xff] %v893
    %1022 = vst [vmem:[#allocation5 + $0x338] sm:$0xff] %v894
    %1023 = vst [vmem:[#allocation5 + $0x340] sm:$0xff] %v895
    %1024 = vst [vmem:[#allocation5 + $0x348] sm:$0xff] %v896
    %1025 = vst [vmem:[#allocation5 + $0x350] sm:$0xff] %v897
    %1026 = vst [vmem:[#allocation5 + $0x358] sm:$0xff] %v898
    %1027 = vst [vmem:[#allocation5 + $0x360] sm:$0xff] %v899
    %1028 = vst [vmem:[#allocation5 + $0x368] sm:$0xff] %v900
    %1029 = vst [vmem:[#allocation5 + $0x370] sm:$0xff] %v901
    %1030 = vst [vmem:[#allocation5 + $0x378] sm:$0xff] %v902
    %1031 = vst [vmem:[#allocation5 + $0x380] sm:$0xff] %v903
    %1032 = vst [vmem:[#allocation5 + $0x388] sm:$0xff] %v904
    %1033 = vst [vmem:[#allocation5 + $0x390] sm:$0xff] %v905
    %1034 = vst [vmem:[#allocation5 + $0x398] sm:$0xff] %v906
    %1035 = vst [vmem:[#allocation5 + $0x3a0] sm:$0xff] %v907
    %1036 = vst [vmem:[#allocation5 + $0x3a8] sm:$0xff] %v908
    %1037 = vst [vmem:[#allocation5 + $0x3b0] sm:$0xff] %v909
    %1038 = vst [vmem:[#allocation5 + $0x3b8] sm:$0xff] %v910
    %1039 = vst [vmem:[#allocation5 + $0x3c0] sm:$0xff] %v911
    %1040 = vst [vmem:[#allocation5 + $0x3c8] sm:$0xff] %v912
    %1041 = vst [vmem:[#allocation5 + $0x3d0] sm:$0xff] %v913
    %1042 = vst [vmem:[#allocation5 + $0x3d8] sm:$0xff] %v914
    %1043 = vst [vmem:[#allocation5 + $0x3e0] sm:$0xff] %v915
    %1044 = vst [vmem:[#allocation5 + $0x3e8] sm:$0xff] %v916
    %1045 = vst [vmem:[#allocation5 + $0x3f0] sm:$0xff] %v917
    %1046 = vst [vmem:[#allocation5 + $0x3f8] sm:$0xff] %v918
    // Predicated region
    $region10: #{tpu_custom_call.1} parent=1 // pred_check
      _
    $region11: #{tpu_custom_call.1} parent=1 // pred_check_branch
      %1048 = sbr.rel (0) target = $region13
    $region12: #{tpu_custom_call.1} parent=1 // pred_region
      %s1050 = ssub.s32 16384, 128
      %1051 = vsyncadd [#allocation4], %s1050
      %s1052 = sshll.u32 [#allocation5], 4
      %s1053 = int_to_ptr.vmem [resolvable:$true] %s1052
      %1058 = dma.vmem_to_hbm [thread:$0]  %s1053, 128, %s1, [#allocation4], 128, 128, 8
    $region13: #{tpu_custom_call.1} parent=1 // pred_fallthru
      _
    // Predicated region
    $region14: #{tpu_custom_call.1} parent=1 // pred_check
      _
    $region15: #{tpu_custom_call.1} parent=1 // pred_check_branch
      %1060 = sbr.rel (0) target = $region17
    $region16: #{tpu_custom_call.1} parent=1 // pred_region
      %1061 = dma.done [#allocation4], 16384
    $region17: #{tpu_custom_call.1} parent=1 // pred_fallthru
      _
    %1062 = vsyncpa [#allocation3], 1
    %1063 = vsyncpa [#allocation4], 1

</llo_original>
